<compile_context>
chip_gen: v7x
topology: tpu7x:2x2x1
jax: 0.10.0
libtpu: 0.0.40
codegen_flags: <defaults>
</compile_context>

<pallas_src>
import functools
import math

import jax
import jax.numpy as jnp
from jax.experimental import pallas as pl
from jax.experimental.pallas import tpu as pltpu

_MASK_VALUE = -1.0e30   # fill for off-pattern logits
_M_INIT = -1.0e29       # running-max sentinel (finite, >> _MASK_VALUE) so fully-masked rows
                        # still give exp(_MASK_VALUE - m) -> exact 0 and corr = exp(0) = 1


def _round_up(x, m):
    return (x + m - 1) // m * m


def _tiles_for(n, tile_i_max=256, tile_j_max=1024):
    """Row/column tile sizes and the common padded node count for an N-node graph.

    tile_i is a multiple of 32 (int8 adj sublane tile), tile_j a multiple of 128 (lane dim).
    Both divide n_pad. VMEM per grid step is bounded by the tiles, independent of N, so the
    same configuration fits v5e/v6e (128 MiB) and v7x (64 MiB) without re-derivation.
    """
    tile_i = int(min(tile_i_max, _round_up(n, 32)))
    tile_j = int(min(tile_j_max, _round_up(n, 128)))
    lcm = tile_i * tile_j // math.gcd(tile_i, tile_j)
    n_pad = _round_up(n, lcm)
    return tile_i, tile_j, n_pad


def prepare_adj(adj, *, tile_i_max=256, tile_j_max=1024):
    """Build the padded int8 adjacency ONCE per graph (it is static across layers/steps)."""
    n = adj.shape[0]
    _, _, n_pad = _tiles_for(n, tile_i_max, tile_j_max)
    adj_i8 = (adj > 0).astype(jnp.int8)
    if n_pad == n:
        return adj_i8
    return jnp.zeros((n_pad, n_pad), jnp.int8).at[:n, :n].set(adj_i8)


def gatv2_attn_kernel(e1_ref, e2_ref, adj_ref, wh_ref, out_ref,
                      m_ref, l_ref, acc_ref, *, concat):
    # e1_ref: (TI, 1) f32   e2_ref: (1, TJ) f32   adj_ref: (TI, TJ) int8 edge mask
    # wh_ref: (TJ, F_pad) bf16                    out_ref: (TI, F_pad) bf16
    # scratch: m_ref/l_ref (TI, 1) f32, acc_ref (TI, F_pad) f32
    j = pl.program_id(1)

    @pl.when(j == 0)
    def _():
        m_ref[...] = jnp.full_like(m_ref, _M_INIT)
        l_ref[...] = jnp.zeros_like(l_ref)
        acc_ref[...] = jnp.zeros_like(acc_ref)

    # int8 -> f32 (standard dequant-style convert) then mask; off-pattern logits get _MASK_VALUE.
    mask = adj_ref[...].astype(jnp.float32) > 0.0
    s = jnp.where(mask, e1_ref[...] + e2_ref[...], jnp.float32(_MASK_VALUE))   # (TI, TJ)

    m_prev = m_ref[...]
    m_new = jnp.maximum(m_prev, jnp.max(s, axis=-1, keepdims=True))            # (TI, 1)
    # Off-pattern lanes sit at -1e30 and m_new >= -1e29, so (s - m_new) <= -9e29 and the f32
    # exp underflows to exactly 0 — no second select needed (empty rows stay all-zero and are
    # additionally guarded by the denom > 0 check at finalize).
    p = jnp.exp(s - m_new)                                                     # (TI, TJ) f32
    corr = jnp.exp(m_prev - m_new)                                             # (TI, 1)

    l_ref[...] = corr * l_ref[...] + jnp.sum(p, axis=-1, keepdims=True)
    # bf16 MXU matmul with f32 accumulation into the resident accumulator.
    acc_ref[...] = corr * acc_ref[...] + jnp.dot(
        p.astype(jnp.bfloat16), wh_ref[...], preferred_element_type=jnp.float32)
    m_ref[...] = m_new

    @pl.when(j == pl.num_programs(1) - 1)
    def _():
        l = l_ref[...]
        # Fused normalization; reciprocal goes to the otherwise-idle EUP slot. denom==0 rows
        # (no out-edges / padding) are forced to exact zero, matching the torch sparse path.
        inv = jnp.where(l > 0, pl.reciprocal(l, approx=True), jnp.float32(0.0))
        h_prime = acc_ref[...] * inv
        if concat:
            # F.elu (exp - 1: guaranteed Mosaic lowering; accuracy delta negligible here)
            h_prime = jnp.where(h_prime > 0, h_prime, jnp.exp(h_prime) - 1.0)
        out_ref[...] = h_prime.astype(out_ref.dtype)


def gatv2_forward(h, W, a, adj_p, *, alpha=0.2, concat=True,
                  tile_i_max=256, tile_j_max=1024):
    """h: (N, F_in) f32; W: (F_in, F_out); a: (2*F_out, 1); adj_p: prepare_adj(...) int8 mask."""
    N = h.shape[0]
    f_out = W.shape[1]
    tile_i, tile_j, n_pad = _tiles_for(N, tile_i_max, tile_j_max)
    assert adj_p.shape == (n_pad, n_pad) and adj_p.dtype == jnp.int8, \
        "adj_p must come from prepare_adj() with the same tile configuration"

    # ---- Stage 1 (plain XLA): projection + attention-logit vectors ----
    Wh = jnp.dot(h, W)
    Wh = jnp.where(Wh > 0, Wh, jnp.float32(alpha) * Wh)            # LeakyReLU(Wh): matches module
    e1 = Wh @ a[:f_out, :]                                         # (N, 1)
    e2 = (Wh @ a[f_out:, :]).reshape(1, N)                         # (1, N)

    # ---- Padding: lane-dense feature dim, node dim to the common tile multiple ----
    f_pad = _round_up(f_out, 128)
    e1_p = jnp.zeros((n_pad, 1), jnp.float32).at[:N, :].set(e1.astype(jnp.float32))
    e2_p = jnp.zeros((1, n_pad), jnp.float32).at[:, :N].set(e2.astype(jnp.float32))
    wh_p = jnp.zeros((n_pad, f_pad), jnp.bfloat16).at[:N, :f_out].set(Wh.astype(jnp.bfloat16))

    # VMEM budget per grid step (double-buffered streamed blocks + resident scratch) — bounded by
    # the tiles, not by N, so it fits every generation; keep an explicit modest limit.
    vmem_est = (2 * tile_i * tile_j                       # adj int8 (double-buffered)
                + 2 * tile_j * f_pad * 2                  # Wh bf16 k-tile (double-buffered)
                + 2 * tile_i * f_pad * 2                  # out bf16 block (double-buffered)
                + 2 * (tile_i + tile_j) * 4               # e1 / e2 blocks
                + tile_i * f_pad * 4 + 2 * tile_i * 4)    # acc + m + l scratch
    vmem_limit = int(min(96 * 1024 * 1024, max(32 * 1024 * 1024, 4 * vmem_est)))

    kernel = functools.partial(gatv2_attn_kernel, concat=bool(concat))
    out = pl.pallas_call(
        kernel,
        out_shape=jax.ShapeDtypeStruct((n_pad, f_pad), jnp.bfloat16),
        grid_spec=pltpu.PrefetchScalarGridSpec(
            num_scalar_prefetch=0,
            grid=(n_pad // tile_i, n_pad // tile_j),       # (row blocks, key/column blocks)
            in_specs=[
                pl.BlockSpec((tile_i, 1), lambda i, j: (i, 0)),        # e1 row block
                pl.BlockSpec((1, tile_j), lambda i, j: (0, j)),        # e2 column block
                pl.BlockSpec((tile_i, tile_j), lambda i, j: (i, j)),   # adj tile (int8, streamed)
                pl.BlockSpec((tile_j, f_pad), lambda i, j: (j, 0)),    # Wh k-tile (bf16)
            ],
            out_specs=pl.BlockSpec((tile_i, f_pad), lambda i, j: (i, 0)),
            scratch_shapes=[
                pltpu.VMEM((tile_i, 1), jnp.float32),      # running row max
                pltpu.VMEM((tile_i, 1), jnp.float32),      # running denom
                pltpu.VMEM((tile_i, f_pad), jnp.float32),  # output accumulator
            ],
        ),
        compiler_params=pltpu.CompilerParams(
            # TODO(synk): on v7x (2 TCs/chip) use pltpu.CORE_PARALLEL on the row axis;
            # kept generation-neutral here ("parallel" rows, "arbitrary" reduction axis).
            dimension_semantics=("parallel", "arbitrary"),
            vmem_limit_bytes=vmem_limit,
        ),
    )(e1_p, e2_p, adj_p, wh_p)

    return out[:N, :f_out].astype(jnp.float32)


if __name__ == "__main__":
    nnode, in_features, out_features = 16, 32, 64
    alpha = 0.2

    key = jax.random.PRNGKey(0)
    k_h, k_w, k_a = jax.random.split(key, 3)

    # deterministic xavier_uniform-like init (gain = 1.414), same shapes as the torch module
    def xavier_uniform(k, shape, gain=1.414):
        fan_in, fan_out = shape[0], shape[1]
        bound = gain * (6.0 / (fan_in + fan_out)) ** 0.5
        return jax.random.uniform(k, shape, jnp.float32, -bound, bound)

    h = jax.random.normal(k_h, (nnode, in_features), jnp.float32)
    W = xavier_uniform(k_w, (in_features, out_features))
    a = xavier_uniform(k_a, (2 * out_features, 1))

    # deterministic edge_index: self-loops + bidirectional ring
    src, dst = [], []
    for i in range(nnode):
        src += [i, i, i]
        dst += [i, (i + 1) % nnode, (i - 1) % nnode]
    edge_index = jnp.array([src, dst], dtype=jnp.int32)

    # glue: dense 0/1 edge mask from edge_index (no duplicate edges); padded int8 built ONCE
    adj = jnp.zeros((nnode, nnode), jnp.float32).at[edge_index[0], edge_index[1]].set(1.0)
    adj_p = jax.block_until_ready(prepare_adj(adj))

    out = gatv2_forward(h, W, a, adj_p, alpha=alpha, concat=True)
    out = jax.block_until_ready(out)

    # pure-JAX f32 reference (same math as the torch sparse path)
    Wh = jnp.dot(h, W)
    Wh = jnp.where(Wh > 0, Wh, alpha * Wh)
    e1 = Wh @ a[:out_features]
    e2 = Wh @ a[out_features:]
    scores = e1 + e2.T
    masked = jnp.where(adj > 0, scores, -1e30)
    p = jnp.exp(masked - jnp.max(masked, axis=1, keepdims=True)) * adj
    denom = p.sum(axis=1, keepdims=True)
    attn = p / jnp.where(denom > 0, denom, 1.0)
    ref = attn @ Wh
    ref = jnp.where(ref > 0, ref, jnp.exp(ref) - 1.0)

    assert out.shape == (nnode, out_features)
    # bf16 matmul inputs / bf16 output + approx reciprocal -> correspondingly loose tolerance
    assert jnp.allclose(out, ref, rtol=3e-2, atol=3e-2), "mismatch vs reference"
    print("KERNEL_OK")
</pallas_src>

<mosaic_0001>
module attributes {stable_mosaic.version = 11 : i64} {
  func.func @gatv2_attn_kernel(%arg0: i32, %arg1: i32, %arg2: memref<32x1xf32, #tpu.memory_space<vmem>>, %arg3: memref<1x128xf32, #tpu.memory_space<vmem>>, %arg4: memref<32x128xi8, #tpu.memory_space<vmem>>, %arg5: memref<128x128xbf16, #tpu.memory_space<vmem>>, %arg6: memref<32x128xbf16, #tpu.memory_space<vmem>>, %arg7: memref<32x1xf32, #tpu.memory_space<vmem>>, %arg8: memref<32x1xf32, #tpu.memory_space<vmem>>, %arg9: memref<32x128xf32, #tpu.memory_space<vmem>>) attributes {dimension_semantics = [#tpu.dimension_semantics<parallel>, #tpu.dimension_semantics<arbitrary>], iteration_bounds = array<i64: 4, 1>, scalar_prefetch = 0 : i64, scratch_operands = 3 : i64, tpu.core_type = #tpu.core_type<tc>, window_params = [{transform_indices = @transform_0, window_bounds = array<i64: 32, 1>}, {transform_indices = @transform_1, window_bounds = array<i64: 1, 128>}, {transform_indices = @transform_2, window_bounds = array<i64: 32, 128>}, {transform_indices = @transform_3, window_bounds = array<i64: 128, 128>}, {transform_indices = @transform_4, window_bounds = array<i64: 32, 128>}]} {
    %c0_i32 = arith.constant 0 : i32
    %0 = arith.cmpi eq, %arg1, %c0_i32 : i32
    %1 = arith.extui %0 : i1 to i32
    %c0_i32_0 = arith.constant 0 : i32
    %2 = arith.cmpi ne, %1, %c0_i32_0 : i32
    scf.if %2 {
      %cst_26 = arith.constant -1.000000e+29 : f32
      %41 = vector.broadcast %cst_26 : f32 to vector<32x1xf32>
      %c0_27 = arith.constant 0 : index
      %c0_28 = arith.constant 0 : index
      %42 = vector.load %arg7[%c0_27, %c0_28] : memref<32x1xf32, #tpu.memory_space<vmem>>, vector<32x1xf32>
      tpu.vector_store %arg7[%c0_27, %c0_28], %41 {strides = array<i32>} : memref<32x1xf32, #tpu.memory_space<vmem>>, vector<32x1xf32>,
      %cst_29 = arith.constant 0.000000e+00 : f32
      %43 = vector.broadcast %cst_29 : f32 to vector<32x1xf32>
      %c0_30 = arith.constant 0 : index
      %c0_31 = arith.constant 0 : index
      %44 = vector.load %arg8[%c0_30, %c0_31] : memref<32x1xf32, #tpu.memory_space<vmem>>, vector<32x1xf32>
      tpu.vector_store %arg8[%c0_30, %c0_31], %43 {strides = array<i32>} : memref<32x1xf32, #tpu.memory_space<vmem>>, vector<32x1xf32>,
      %cst_32 = arith.constant 0.000000e+00 : f32
      %45 = vector.broadcast %cst_32 : f32 to vector<32x128xf32>
      %c0_33 = arith.constant 0 : index
      %c0_34 = arith.constant 0 : index
      %46 = vector.load %arg9[%c0_33, %c0_34] : memref<32x128xf32, #tpu.memory_space<vmem>>, vector<32x128xf32>
      tpu.vector_store %arg9[%c0_33, %c0_34], %45 {strides = array<i32>} : memref<32x128xf32, #tpu.memory_space<vmem>>, vector<32x128xf32>,
    } else {
    }
    %c0 = arith.constant 0 : index
    %c0_1 = arith.constant 0 : index
    %3 = vector.load %arg4[%c0, %c0_1] : memref<32x128xi8, #tpu.memory_space<vmem>>, vector<32x128xi8>
    %4 = arith.sitofp %3 : vector<32x128xi8> to vector<32x128xf32>
    %cst = arith.constant 0.000000e+00 : f32
    %5 = vector.broadcast %cst : f32 to vector<32x128xf32>
    %6 = arith.cmpf ogt, %4, %5 : vector<32x128xf32>
    %c0_2 = arith.constant 0 : index
    %c0_3 = arith.constant 0 : index
    %7 = vector.load %arg2[%c0_2, %c0_3] : memref<32x1xf32, #tpu.memory_space<vmem>>, vector<32x1xf32>
    %c0_4 = arith.constant 0 : index
    %c0_5 = arith.constant 0 : index
    %8 = vector.load %arg3[%c0_4, %c0_5] : memref<1x128xf32, #tpu.memory_space<vmem>>, vector<1x128xf32>
    %9 = vector.broadcast %7 : vector<32x1xf32> to vector<32x128xf32>
    %10 = vector.broadcast %8 : vector<1x128xf32> to vector<32x128xf32>
    %11 = arith.addf %9, %10 : vector<32x128xf32>
    %cst_6 = arith.constant -1.000000e+30 : f32
    %12 = vector.broadcast %cst_6 : f32 to vector<32x128xf32>
    %13 = arith.select %6, %11, %12 : vector<32x128xi1>, vector<32x128xf32>
    %c0_7 = arith.constant 0 : index
    %c0_8 = arith.constant 0 : index
    %14 = vector.load %arg7[%c0_7, %c0_8] : memref<32x1xf32, #tpu.memory_space<vmem>>, vector<32x1xf32>
    %cst_9 = arith.constant dense<0xFF800000> : vector<32xf32>
    %15 = vector.multi_reduction <maximumf>, %13, %cst_9 [1] : vector<32x128xf32> to vector<32xf32>
    %16 = vector.shape_cast %15 : vector<32xf32> to vector<32x1xf32>
    %17 = arith.maximumf %14, %16 : vector<32x1xf32>
    %18 = vector.broadcast %17 : vector<32x1xf32> to vector<32x128xf32>
    %19 = arith.subf %13, %18 : vector<32x128xf32>
    %20 = math.exp %19 : vector<32x128xf32>
    %21 = arith.subf %14, %17 : vector<32x1xf32>
    %22 = math.exp %21 : vector<32x1xf32>
    %c0_10 = arith.constant 0 : index
    %c0_11 = arith.constant 0 : index
    %23 = vector.load %arg8[%c0_10, %c0_11] : memref<32x1xf32, #tpu.memory_space<vmem>>, vector<32x1xf32>
    %24 = arith.mulf %22, %23 : vector<32x1xf32>
    %cst_12 = arith.constant dense<0.000000e+00> : vector<32xf32>
    %25 = vector.multi_reduction <add>, %20, %cst_12 [1] : vector<32x128xf32> to vector<32xf32>
    %26 = vector.shape_cast %25 : vector<32xf32> to vector<32x1xf32>
    %27 = arith.addf %24, %26 : vector<32x1xf32>
    %c0_13 = arith.constant 0 : index
    %c0_14 = arith.constant 0 : index
    %28 = vector.load %arg8[%c0_13, %c0_14] : memref<32x1xf32, #tpu.memory_space<vmem>>, vector<32x1xf32>
    tpu.vector_store %arg8[%c0_13, %c0_14], %27 {strides = array<i32>} : memref<32x1xf32, #tpu.memory_space<vmem>>, vector<32x1xf32>,
    %c0_15 = arith.constant 0 : index
    %c0_16 = arith.constant 0 : index
    %29 = vector.load %arg9[%c0_15, %c0_16] : memref<32x128xf32, #tpu.memory_space<vmem>>, vector<32x128xf32>
    %30 = vector.broadcast %22 : vector<32x1xf32> to vector<32x128xf32>
    %31 = arith.mulf %30, %29 : vector<32x128xf32>
    %32 = arith.truncf %20 : vector<32x128xf32> to vector<32x128xbf16>
    %c0_17 = arith.constant 0 : index
    %c0_18 = arith.constant 0 : index
    %33 = vector.load %arg5[%c0_17, %c0_18] : memref<128x128xbf16, #tpu.memory_space<vmem>>, vector<128x128xbf16>
    %cst_19 = arith.constant dense<0.000000e+00> : vector<32x128xf32>
    %34 = tpu.matmul %32, %33, %cst_19 {dimension_numbers = #tpu.dot_dimension_numbers<[1], [0], [0], [1], [0, 0, 1, 1], [], []>} : vector<32x128xbf16>, vector<128x128xbf16>, vector<32x128xf32> -> vector<32x128xf32>
    %35 = arith.addf %31, %34 : vector<32x128xf32>
    %c0_20 = arith.constant 0 : index
    %c0_21 = arith.constant 0 : index
    %36 = vector.load %arg9[%c0_20, %c0_21] : memref<32x128xf32, #tpu.memory_space<vmem>>, vector<32x128xf32>
    tpu.vector_store %arg9[%c0_20, %c0_21], %35 {strides = array<i32>} : memref<32x128xf32, #tpu.memory_space<vmem>>, vector<32x128xf32>,
    %c0_22 = arith.constant 0 : index
    %c0_23 = arith.constant 0 : index
    %37 = vector.load %arg7[%c0_22, %c0_23] : memref<32x1xf32, #tpu.memory_space<vmem>>, vector<32x1xf32>
    tpu.vector_store %arg7[%c0_22, %c0_23], %17 {strides = array<i32>} : memref<32x1xf32, #tpu.memory_space<vmem>>, vector<32x1xf32>,
    %c0_i32_24 = arith.constant 0 : i32
    %38 = arith.cmpi eq, %arg1, %c0_i32_24 : i32
    %39 = arith.extui %38 : i1 to i32
    %c0_i32_25 = arith.constant 0 : i32
    %40 = arith.cmpi ne, %39, %c0_i32_25 : i32
    scf.if %40 {
      %c0_26 = arith.constant 0 : index
      %c0_27 = arith.constant 0 : index
      %41 = vector.load %arg8[%c0_26, %c0_27] : memref<32x1xf32, #tpu.memory_space<vmem>>, vector<32x1xf32>
      %cst_28 = arith.constant 0.000000e+00 : f32
      %42 = vector.broadcast %cst_28 : f32 to vector<32x1xf32>
      %43 = arith.cmpf ogt, %41, %42 : vector<32x1xf32>
      %44 = tpu.reciprocal %41 {approx = true} : vector<32x1xf32> -> vector<32x1xf32>
      %cst_29 = arith.constant 0.000000e+00 : f32
      %45 = vector.broadcast %cst_29 : f32 to vector<32x1xf32>
      %46 = arith.select %43, %44, %45 : vector<32x1xi1>, vector<32x1xf32>
      %c0_30 = arith.constant 0 : index
      %c0_31 = arith.constant 0 : index
      %47 = vector.load %arg9[%c0_30, %c0_31] : memref<32x128xf32, #tpu.memory_space<vmem>>, vector<32x128xf32>
      %48 = vector.broadcast %46 : vector<32x1xf32> to vector<32x128xf32>
      %49 = arith.mulf %47, %48 : vector<32x128xf32>
      %cst_32 = arith.constant 0.000000e+00 : f32
      %50 = vector.broadcast %cst_32 : f32 to vector<32x128xf32>
      %51 = arith.cmpf ogt, %49, %50 : vector<32x128xf32>
      %52 = math.exp %49 : vector<32x128xf32>
      %cst_33 = arith.constant 1.000000e+00 : f32
      %53 = vector.broadcast %cst_33 : f32 to vector<32x128xf32>
      %54 = arith.subf %52, %53 : vector<32x128xf32>
      %55 = arith.select %51, %49, %54 : vector<32x128xi1>, vector<32x128xf32>
      %56 = arith.truncf %55 : vector<32x128xf32> to vector<32x128xbf16>
      %c0_34 = arith.constant 0 : index
      %c0_35 = arith.constant 0 : index
      %57 = vector.load %arg6[%c0_34, %c0_35] : memref<32x128xbf16, #tpu.memory_space<vmem>>, vector<32x128xbf16>
      tpu.vector_store %arg6[%c0_34, %c0_35], %56 {strides = array<i32>} : memref<32x128xbf16, #tpu.memory_space<vmem>>, vector<32x128xbf16>,
    } else {
    }
    return
  }
  func.func @transform_0(%arg0: i32, %arg1: i32) -> (i32, i32) {
    %c0_i32 = arith.constant 0 : i32
    %c0_i32_0 = arith.constant 0 : i32
    return %arg0, %c0_i32 : i32, i32
  }
  func.func @transform_1(%arg0: i32, %arg1: i32) -> (i32, i32) {
    %c0_i32 = arith.constant 0 : i32
    %c0_i32_0 = arith.constant 0 : i32
    return %c0_i32, %arg1 : i32, i32
  }
  func.func @transform_2(%arg0: i32, %arg1: i32) -> (i32, i32) {
    %c0_i32 = arith.constant 0 : i32
    return %arg0, %arg1 : i32, i32
  }
  func.func @transform_3(%arg0: i32, %arg1: i32) -> (i32, i32) {
    %c0_i32 = arith.constant 0 : i32
    %c0_i32_0 = arith.constant 0 : i32
    return %arg1, %c0_i32 : i32, i32
  }
  func.func @transform_4(%arg0: i32, %arg1: i32) -> (i32, i32) {
    %c0_i32 = arith.constant 0 : i32
    %c0_i32_0 = arith.constant 0 : i32
    return %arg0, %c0_i32 : i32, i32
  }
}

</mosaic_0001>

<llo_original>
// kernel: tpu_custom_call.1
$region0: #{tpu_custom_call.1}
  #allocation0 [shape = 'u32[]', space=smem, size = 0x4, offset = 0x4, fixed_abs, tag = 'smem constant byte address 0x4 - core index']
  #allocation1 [shape = 'u32[144,128]{1,0:T(1,128)}', space=vmem, size = 0x12000, scoped, tag = 'internal scratch']
  #allocation2 [shape = 'f32[32,1]{1,0:T(8,128)}', space=vmem, size = 0x4000, scoped, tag = 'scratch operand']
  #allocation3 [shape = 'f32[32,1]{1,0:T(8,128)}', space=vmem, size = 0x4000, scoped, tag = 'scratch operand']
  #allocation4 [shape = 'f32[32,128]{1,0:T(8,128)}', space=vmem, size = 0x4000, scoped, tag = 'scratch operand']
  %s0 = inlined_call_operand.vmem [shape: f32[128,1], index: 0, kind: input, shape index: {}]
  %s1 = inlined_call_operand.vmem [shape: f32[1,128], index: 1, kind: input, shape index: {}]
  %s2 = inlined_call_operand.vmem [shape: s8[128,128], index: 2, kind: input, shape index: {}]
  %s3 = inlined_call_operand.vmem [shape: bf16[128,128], index: 3, kind: input, shape index: {}]
  %s4 = inlined_call_operand.hbm [shape: bf16[128,128], index: 4, kind: output, shape index: {}]
  %s5 = sld [smem:[#allocation0]]
  $region57: #{tpu_custom_call.1} parent=0
    _
  %s7 = ssub.s32 1, %s5
  %s8 = scalar_select 0, %s7, %s5
  $region1: #{tpu_custom_call.1} parent=0
    #allocation5 [shape = 'u8[16384]{0}', space=vmem, size = 0x4000, scoped, tag = 'output window, operand 0']
    #allocation6 [shape = 's32[2]{0}', space=sflag, size = 0x8, scoped, tag = 'scoped memory for tpu_custom_call.1']
    %9 = vsyncpa [#allocation6], 0
    %s10 = scalar_lea.sflag [#allocation6], 1
    %11 = vsyncpa %s10, 0
    loop: start=0, step=1, limit=6
    $region2: #{tpu_custom_call.1} parent=1 // loop_pre_header
      _
    $region3: #{tpu_custom_call.1} parent=1 // loop_header
      %s13 = sphi 0, %s17
      %p14 = scmp.ge.s32.totalorder %s13, 6
      %s20 = sphi 0, %s32
      %s21 = sphi 0, %s28
      %s22 = sphi 0, %s20
      %s23 = sphi 0, %s21
      %s24 = sphi 0, %s22
      %s25 = sphi 0, %s23
      %s35 = sphi 0, %s37
      %s38 = sphi 0, %s35
      %s39 = sphi 0, %s38
      %s55 = sphi 0, %s39
      %s61 = sphi 0, %s63
      %s64 = sphi 0, %s61
      %s65 = sphi 0, %s64
      %s81 = sphi 0, %s65
      %s89 = sphi 0, %s91
      %s92 = sphi 0, %s89
      %s93 = sphi 0, %s92
      %s109 = sphi 0, %s93
      %s115 = sphi 0, %s117
      %s118 = sphi 0, %s115
      %s119 = sphi 0, %s118
      %s135 = sphi 0, %s119
      %s141 = sphi 0, %s143
      %s144 = sphi 0, %s141
      %s145 = sphi 0, %s144
      %s161 = sphi 0, %s145
    $region4: #{tpu_custom_call.1} parent=1 // loop_header_branch
      %16 = sbr.rel (%p14) target = $region8
    $region5: #{tpu_custom_call.1} parent=1 // loop_body
      %s18 = ssub.s32 %s13, 1
      %s19 = ssub.s32 %s13, 2
      %s26 = sadd.s32 1, %s21
      %p27 = scmp.ge.s32.totalorder %s26, 1
      %s28 = scalar_select %p27, 0, %s26
      %s29 = sadd.s32 1, %s20
      %s30 = scalar_select %p27, %s29, %s20
      %p31 = scmp.ge.s32.totalorder %s30, 4
      %s32 = scalar_select %p31, 0, %s30
      %s33 = ssub.s32 %s20, %s32
      %p34 = scmp.eq.s32.totalorder %s33, 0
      %s36 = sadd.s32 %s35, 1
      %s37 = scalar_select %p34, %s35, %s36
      %p40 = pneg %p34
      %p41 = scmp.eq.s32.totalorder %s13, 3
      %p42 = por %p40, %p41
      %p43 = scmp.ne.s32.totalorder %s35, %s38
      %p44 = scmp.eq.s32.totalorder %s13, 0
      %p45 = por %p43, %p44
      %p46 = scmp.ne.s32.totalorder %s35, %s38
      %p47 = scmp.eq.s32.totalorder %s18, 3
      %p48 = por %p46, %p47
      %p49 = scmp.ne.s32.totalorder %s38, %s39
      %p50 = scmp.eq.s32.totalorder %s18, 0
      %p51 = por %p49, %p50
      %p52 = scmp.ne.s32.totalorder %s38, %s39
      %p53 = scmp.eq.s32.totalorder %s19, 3
      %p54 = por %p52, %p53
      %p56 = scmp.ne.s32.totalorder %s39, %s55
      %p57 = scmp.eq.s32.totalorder %s19, 0
      %p58 = por %p56, %p57
      %s59 = ssub.s32 %s21, %s28
      %p60 = scmp.eq.s32.totalorder %s59, 0
      %s62 = sadd.s32 %s61, 1
      %s63 = scalar_select %p60, %s61, %s62
      %p66 = pneg %p60
      %p67 = scmp.eq.s32.totalorder %s13, 3
      %p68 = por %p66, %p67
      %p69 = scmp.ne.s32.totalorder %s61, %s64
      %p70 = scmp.eq.s32.totalorder %s13, 0
      %p71 = por %p69, %p70
      %p72 = scmp.ne.s32.totalorder %s61, %s64
      %p73 = scmp.eq.s32.totalorder %s18, 3
      %p74 = por %p72, %p73
      %p75 = scmp.ne.s32.totalorder %s64, %s65
      %p76 = scmp.eq.s32.totalorder %s18, 0
      %p77 = por %p75, %p76
      %p78 = scmp.ne.s32.totalorder %s64, %s65
      %p79 = scmp.eq.s32.totalorder %s19, 3
      %p80 = por %p78, %p79
      %p82 = scmp.ne.s32.totalorder %s65, %s81
      %p83 = scmp.eq.s32.totalorder %s19, 0
      %p84 = por %p82, %p83
      %s85 = ssub.s32 %s20, %s32
      %s86 = ssub.s32 %s21, %s28
      %s87 = sor.u32 %s85, %s86
      %p88 = scmp.eq.s32.totalorder %s87, 0
      %s90 = sadd.s32 %s89, 1
      %s91 = scalar_select %p88, %s89, %s90
      %p94 = pneg %p88
      %p95 = scmp.eq.s32.totalorder %s13, 3
      %p96 = por %p94, %p95
      %p97 = scmp.ne.s32.totalorder %s89, %s92
      %p98 = scmp.eq.s32.totalorder %s13, 0
      %p99 = por %p97, %p98
      %p100 = scmp.ne.s32.totalorder %s89, %s92
      %p101 = scmp.eq.s32.totalorder %s18, 3
      %p102 = por %p100, %p101
      %p103 = scmp.ne.s32.totalorder %s92, %s93
      %p104 = scmp.eq.s32.totalorder %s18, 0
      %p105 = por %p103, %p104
      %p106 = scmp.ne.s32.totalorder %s92, %s93
      %p107 = scmp.eq.s32.totalorder %s19, 3
      %p108 = por %p106, %p107
      %p110 = scmp.ne.s32.totalorder %s93, %s109
      %p111 = scmp.eq.s32.totalorder %s19, 0
      %p112 = por %p110, %p111
      %s113 = ssub.s32 %s21, %s28
      %p114 = scmp.eq.s32.totalorder %s113, 0
      %s116 = sadd.s32 %s115, 1
      %s117 = scalar_select %p114, %s115, %s116
      %p120 = pneg %p114
      %p121 = scmp.eq.s32.totalorder %s13, 3
      %p122 = por %p120, %p121
      %p123 = scmp.ne.s32.totalorder %s115, %s118
      %p124 = scmp.eq.s32.totalorder %s13, 0
      %p125 = por %p123, %p124
      %p126 = scmp.ne.s32.totalorder %s115, %s118
      %p127 = scmp.eq.s32.totalorder %s18, 3
      %p128 = por %p126, %p127
      %p129 = scmp.ne.s32.totalorder %s118, %s119
      %p130 = scmp.eq.s32.totalorder %s18, 0
      %p131 = por %p129, %p130
      %p132 = scmp.ne.s32.totalorder %s118, %s119
      %p133 = scmp.eq.s32.totalorder %s19, 3
      %p134 = por %p132, %p133
      %p136 = scmp.ne.s32.totalorder %s119, %s135
      %p137 = scmp.eq.s32.totalorder %s19, 0
      %p138 = por %p136, %p137
      %s139 = ssub.s32 %s20, %s32
      %p140 = scmp.eq.s32.totalorder %s139, 0
      %s142 = sadd.s32 %s141, 1
      %s143 = scalar_select %p140, %s141, %s142
      %p146 = pneg %p140
      %p147 = scmp.eq.s32.totalorder %s13, 3
      %p148 = por %p146, %p147
      %p149 = scmp.ne.s32.totalorder %s141, %s144
      %p150 = scmp.eq.s32.totalorder %s13, 0
      %p151 = por %p149, %p150
      %p152 = scmp.ne.s32.totalorder %s141, %s144
      %p153 = scmp.eq.s32.totalorder %s18, 3
      %p154 = por %p152, %p153
      %p155 = scmp.ne.s32.totalorder %s144, %s145
      %p156 = scmp.eq.s32.totalorder %s18, 0
      %p157 = por %p155, %p156
      %p158 = scmp.ne.s32.totalorder %s144, %s145
      %p159 = scmp.eq.s32.totalorder %s19, 3
      %p160 = por %p158, %p159
      %p162 = scmp.ne.s32.totalorder %s145, %s161
      %p163 = scmp.eq.s32.totalorder %s19, 0
      %p164 = por %p162, %p163
      %p165 = scmp.le.s32.totalorder 1, %s13
      %p166 = scmp.lt.s32.totalorder %s13, 5
      %p167 = pnand %p165, %p166
      %p168 = pneg %p167
      // Predicated region
      $region9: #{tpu_custom_call.1} parent=5 // pred_check
        _
      $region10: #{tpu_custom_call.1} parent=5 // pred_check_branch
        %170 = sbr.rel (%p167) target = $region12
      $region11: #{tpu_custom_call.1} parent=5 // pred_region
        %s171 = ssub.s32 %s13, 1
        // Predicated region
        $region13: #{tpu_custom_call.1} parent=11 // pred_check
          %p172 = pneg %p77
        $region14: #{tpu_custom_call.1} parent=11 // pred_check_branch
          %174 = sbr.rel (%p172) target = $region16
        $region15: #{tpu_custom_call.1} parent=11 // pred_region
          %p175 = scmp.lt.s32.totalorder %s23, 0
          %s176 = scalar_select %p175, %s23, 0
          %s177 = scalar_lea.vmem %s1, %s176
        $region16: #{tpu_custom_call.1} parent=11 // pred_fallthru
          _
        // Predicated region
        $region17: #{tpu_custom_call.1} parent=11 // pred_check
          %p178 = pneg %p131
        $region18: #{tpu_custom_call.1} parent=11 // pred_check_branch
          %180 = sbr.rel (%p178) target = $region20
        $region19: #{tpu_custom_call.1} parent=11 // pred_region
          %s181 = smul.u32 16, %s23
          %p182 = scmp.lt.s32.totalorder %s181, 15
          %s183 = scalar_select %p182, %s181, 15
          %s184 = smul.addr %s183, 4
          %s185 = scalar_lea.vmem %s3, %s184
          %s186 = smul.u32 16, %s23
        $region20: #{tpu_custom_call.1} parent=11 // pred_fallthru
          _
      $region12: #{tpu_custom_call.1} parent=5 // pred_fallthru
        _
      %p187 = scmp.lt.s32.totalorder %s13, 4
      // Predicated region
      $region21: #{tpu_custom_call.1} parent=5 // pred_check
        %p188 = pneg %p187
      $region22: #{tpu_custom_call.1} parent=5 // pred_check_branch
        %190 = sbr.rel (%p188) target = $region24
      $region23: #{tpu_custom_call.1} parent=5 // pred_region
        // Predicated region
        $region25: #{tpu_custom_call.1} parent=23 // pred_check
          %p191 = pneg %p45
        $region26: #{tpu_custom_call.1} parent=23 // pred_check_branch
          %193 = sbr.rel (%p191) target = $region28
        $region27: #{tpu_custom_call.1} parent=23 // pred_region
          %s194 = smul.u32 4, %s20
          %p195 = scmp.lt.s32.totalorder %s194, 15
          %s196 = scalar_select %p195, %s194, 15
          %s197 = smul.addr %s196, 8
          %s198 = scalar_lea.vmem %s0, %s197
          %s199 = smul.u32 4, %s20
        $region28: #{tpu_custom_call.1} parent=23 // pred_fallthru
          _
        // Predicated region
        $region29: #{tpu_custom_call.1} parent=23 // pred_check
          %p200 = pneg %p99
        $region30: #{tpu_custom_call.1} parent=23 // pred_check_branch
          %202 = sbr.rel (%p200) target = $region32
        $region31: #{tpu_custom_call.1} parent=23 // pred_region
          %p203 = scmp.lt.s32.totalorder %s20, 3
          %s204 = scalar_select %p203, %s20, 3
          %p205 = scmp.lt.s32.totalorder %s21, 0
          %s206 = scalar_select %p205, %s21, 0
          %s207 = sadd.s32 %s206, %s204
          %s208 = smul.addr %s207, 8
          %s209 = scalar_lea.vmem %s2, %s208
        $region32: #{tpu_custom_call.1} parent=23 // pred_fallthru
          _
      $region24: #{tpu_custom_call.1} parent=5 // pred_fallthru
        _
      %p210 = scmp.le.s32.totalorder 1, %s13
      %p211 = scmp.lt.s32.totalorder %s13, 5
      %p212 = pnand %p210, %p211
      %p213 = pneg %p212
      // Predicated region
      $region33: #{tpu_custom_call.1} parent=5 // pred_check
        _
      $region34: #{tpu_custom_call.1} parent=5 // pred_check_branch
        %215 = sbr.rel (%p212) target = $region36
      $region35: #{tpu_custom_call.1} parent=5 // pred_region
        %s216 = ssub.s32 %s13, 1
        %s217 = smul.u32 4, %s22
        %p218 = scmp.lt.s32.totalorder %s217, 15
        %s219 = scalar_select %p218, %s217, 15
        %s220 = smul.addr %s219, 8
        %s221 = scalar_lea.vmem %s0, %s220
        %p222 = pneg %p51
        %p223 = pneg %p48
        %p224 = scmp.lt.s32.totalorder %s23, 0
        %s225 = scalar_select %p224, %s23, 0
        %s226 = scalar_lea.vmem %s1, %s225
        %p227 = pneg %p77
        %p228 = pneg %p74
        %p229 = scmp.lt.s32.totalorder %s22, 3
        %s230 = scalar_select %p229, %s22, 3
        %p231 = scmp.lt.s32.totalorder %s23, 0
        %s232 = scalar_select %p231, %s23, 0
        %s233 = sadd.s32 %s232, %s230
        %s234 = smul.addr %s233, 8
        %s235 = scalar_lea.vmem %s2, %s234
        %p236 = pneg %p105
        %p237 = pneg %p102
        %s238 = smul.u32 16, %s23
        %p239 = scmp.lt.s32.totalorder %s238, 15
        %s240 = scalar_select %p239, %s238, 15
        %s241 = smul.addr %s240, 4
        %s242 = scalar_lea.vmem %s3, %s241
        %p243 = pneg %p131
        %p244 = pneg %p128
        %p245 = pneg %p157
        %p246 = pneg %p154
        %s247 = sand.u32 %s144, 1
        %s248 = scalar_lea.sflag [#allocation6], %s247
        %s249 = sand.u32 %s144, 1
        %s250 = smul.addr %s249, 16
        %s251 = scalar_lea.vmem [#allocation5], %s250
        %s252 = smul.u32 4, %s22
        %p253 = scmp.lt.s32.totalorder %s252, 15
        %s254 = scalar_select %p253, %s252, 15
        %s255 = smul.addr %s254, 8
        %s256 = scalar_lea.vmem %s0, %s255
        %s257 = smul.u32 4, %s22
        %p258 = scmp.lt.s32.totalorder %s23, 0
        %s259 = scalar_select %p258, %s23, 0
        %s260 = scalar_lea.vmem %s1, %s259
        %p261 = scmp.lt.s32.totalorder %s22, 3
        %s262 = scalar_select %p261, %s22, 3
        %p263 = scmp.lt.s32.totalorder %s23, 0
        %s264 = scalar_select %p263, %s23, 0
        %s265 = sadd.s32 %s264, %s262
        %s266 = smul.addr %s265, 8
        %s267 = scalar_lea.vmem %s2, %s266
        %s268 = smul.u32 16, %s23
        %p269 = scmp.lt.s32.totalorder %s268, 15
        %s270 = scalar_select %p269, %s268, 15
        %s271 = smul.addr %s270, 4
        %s272 = scalar_lea.vmem %s3, %s271
        %s273 = smul.u32 16, %s23
        %s274 = smul.u32 4, %s22
        %p276 = scmp.eq.s32.totalorder %s23, 0
        // Predicated region
        $region37: #{tpu_custom_call.1} parent=35 // pred_check
          %p277 = pneg %p276
        $region38: #{tpu_custom_call.1} parent=35 // pred_check_branch
          %279 = sbr.rel (%p277) target = $region40
        $region39: #{tpu_custom_call.1} parent=35 // pred_region
          %vm280 = vcmask 7168
          %281 = vst.msk [vmem:[#allocation2] sm:$0xff] %vm280, -1e+29
          %282 = vst.msk [vmem:[#allocation2 + $0x8] sm:$0xff] %vm280, -1e+29
          %283 = vst.msk [vmem:[#allocation2 + $0x10] sm:$0xff] %vm280, -1e+29
          %284 = vst.msk [vmem:[#allocation2 + $0x18] sm:$0xff] %vm280, -1e+29
          %285 = vst.msk [vmem:[#allocation3] sm:$0xff] %vm280, 0.0
          %286 = vst.msk [vmem:[#allocation3 + $0x8] sm:$0xff] %vm280, 0.0
          %287 = vst.msk [vmem:[#allocation3 + $0x10] sm:$0xff] %vm280, 0.0
          %288 = vst.msk [vmem:[#allocation3 + $0x18] sm:$0xff] %vm280, 0.0
          %289 = vst [vmem:[#allocation4] sm:$0xff] 0.0
          %290 = vst [vmem:[#allocation4 + $0x8] sm:$0xff] 0.0
          %291 = vst [vmem:[#allocation4 + $0x10] sm:$0xff] 0.0
          %292 = vst [vmem:[#allocation4 + $0x18] sm:$0xff] 0.0
        $region40: #{tpu_custom_call.1} parent=35 // pred_fallthru
          _
        %v293 = vld [vmem:[%s267] sm:$0xff]
        %v294 = vunpack.c.0.s8 %v293
        %v295 = vunpack.c.1.s8 %v293
        %v296 = vunpack.c.2.s8 %v293
        %v297 = vunpack.c.3.s8 %v293
        %v298 = vcvt.s32.f32 %v294
        %v299 = vcvt.s32.f32 %v295
        %v300 = vcvt.s32.f32 %v296
        %v301 = vcvt.s32.f32 %v297
        %vm302 = vcmp.gt.f32.partialorder %v298, 0.0
        %vm303 = vcmp.gt.f32.partialorder %v299, 0.0
        %vm304 = vcmp.gt.f32.partialorder %v300, 0.0
        %vm305 = vcmp.gt.f32.partialorder %v301, 0.0
        %v306 = vld [vmem:[%s256] sm:$0xff]
        %v307 = vld [vmem:[%s256 + $0x8] sm:$0xff]
        %v308 = vld [vmem:[%s256 + $0x10] sm:$0xff]
        %v309 = vld [vmem:[%s256 + $0x18] sm:$0xff]
        %v310 = vld [vmem:[%s260] sm:$0x1]
        %312 = vset.pattern.permute.xlu0 0
        %313 = vperm.xlu0 %312, %v306
        %v314 = vpop.permute.xlu0 %313
        %317 = vset.pattern.permute.xlu0 0
        %318 = vperm.xlu0 %317, %v307
        %v319 = vpop.permute.xlu0 %318
        %322 = vset.pattern.permute.xlu0 0
        %323 = vperm.xlu0 %322, %v308
        %v324 = vpop.permute.xlu0 %323
        %327 = vset.pattern.permute.xlu0 0
        %328 = vperm.xlu0 %327, %v309
        %v329 = vpop.permute.xlu0 %328
        %v332 = vlaneseq
        %v333 = vshrl.u32 %v332, 7
        %v334 = vsub.s32 0, %v333
        %v335 = vrot.slane %v310, %v334
        %v337 = vadd.f32 %v314, %v335
        %v338 = vadd.f32 %v319, %v335
        %v339 = vadd.f32 %v324, %v335
        %v340 = vadd.f32 %v329, %v335
        %v341 = vsel %vm302, %v337, -1e+30
        %v342 = vsel %vm303, %v338, -1e+30
        %v343 = vsel %vm304, %v339, -1e+30
        %v344 = vsel %vm305, %v340, -1e+30
        %v345 = vld [vmem:[#allocation2] sm:$0xff]
        %v346 = vld [vmem:[#allocation2 + $0x8] sm:$0xff]
        %v347 = vld [vmem:[#allocation2 + $0x10] sm:$0xff]
        %v348 = vld [vmem:[#allocation2 + $0x18] sm:$0xff]
        %349 = vmax.xlane.f32.xlu0 %v341
        %v350 = vpop.xlane.xlu0 %349
        %351 = vmax.xlane.f32.xlu0 %v342
        %v352 = vpop.xlane.xlu0 %351
        %353 = vmax.xlane.f32.xlu0 %v343
        %v354 = vpop.xlane.xlu0 %353
        %355 = vmax.xlane.f32.xlu0 %v344
        %v356 = vpop.xlane.xlu0 %355
        %v357 = vmax.f32 %v345, %v350
        %v358 = vmax.f32 %v346, %v352
        %v359 = vmax.f32 %v347, %v354
        %v360 = vmax.f32 %v348, %v356
        %362 = vset.pattern.permute.xlu0 0
        %363 = vperm.xlu0 %362, %v357
        %v364 = vpop.permute.xlu0 %363
        %367 = vset.pattern.permute.xlu0 0
        %368 = vperm.xlu0 %367, %v358
        %v369 = vpop.permute.xlu0 %368
        %372 = vset.pattern.permute.xlu0 0
        %373 = vperm.xlu0 %372, %v359
        %v374 = vpop.permute.xlu0 %373
        %377 = vset.pattern.permute.xlu0 0
        %378 = vperm.xlu0 %377, %v360
        %v379 = vpop.permute.xlu0 %378
        %v381 = vsub.f32 %v341, %v364
        %v382 = vsub.f32 %v342, %v369
        %v383 = vsub.f32 %v343, %v374
        %v384 = vsub.f32 %v344, %v379
        %v385 = vmul.f32 %v381, 1.442695
        %v386 = vpow.pop %v385
        %v387 = vmul.f32 %v382, 1.442695
        %v388 = vpow.pop %v387
        %v389 = vmul.f32 %v383, 1.442695
        %v390 = vpow.pop %v389
        %v391 = vmul.f32 %v384, 1.442695
        %v392 = vpow.pop %v391
        %v393 = vsub.f32 %v345, %v357
        %v394 = vsub.f32 %v346, %v358
        %v395 = vsub.f32 %v347, %v359
        %v396 = vsub.f32 %v348, %v360
        %v397 = vmul.f32 %v393, 1.442695
        %v398 = vpow.pop %v397
        %v399 = vmul.f32 %v394, 1.442695
        %v400 = vpow.pop %v399
        %v401 = vmul.f32 %v395, 1.442695
        %v402 = vpow.pop %v401
        %v403 = vmul.f32 %v396, 1.442695
        %v404 = vpow.pop %v403
        %v405 = vld [vmem:[#allocation3] sm:$0xff]
        %v406 = vld [vmem:[#allocation3 + $0x8] sm:$0xff]
        %v407 = vld [vmem:[#allocation3 + $0x10] sm:$0xff]
        %v408 = vld [vmem:[#allocation3 + $0x18] sm:$0xff]
        %v409 = vmul.f32 %v398, %v405
        %v410 = vmul.f32 %v400, %v406
        %v411 = vmul.f32 %v402, %v407
        %v412 = vmul.f32 %v404, %v408
        %413 = vadd.xlane.f32.xlu0 %v386
        %v414 = vpop.xlane.xlu0 %413
        %415 = vadd.xlane.f32.xlu0 %v388
        %v416 = vpop.xlane.xlu0 %415
        %417 = vadd.xlane.f32.xlu0 %v390
        %v418 = vpop.xlane.xlu0 %417
        %419 = vadd.xlane.f32.xlu0 %v392
        %v420 = vpop.xlane.xlu0 %419
        %v421 = vadd.f32 %v409, %v414
        %v422 = vadd.f32 %v410, %v416
        %v423 = vadd.f32 %v411, %v418
        %v424 = vadd.f32 %v412, %v420
        %vm425 = vcmask 7168
        %426 = vst.msk [vmem:[#allocation3] sm:$0xff] %vm425, %v421
        %427 = vst.msk [vmem:[#allocation3 + $0x8] sm:$0xff] %vm425, %v422
        %428 = vst.msk [vmem:[#allocation3 + $0x10] sm:$0xff] %vm425, %v423
        %429 = vst.msk [vmem:[#allocation3 + $0x18] sm:$0xff] %vm425, %v424
        %v430 = vld [vmem:[#allocation4] sm:$0xff]
        %v431 = vld [vmem:[#allocation4 + $0x8] sm:$0xff]
        %v432 = vld [vmem:[#allocation4 + $0x10] sm:$0xff]
        %v433 = vld [vmem:[#allocation4 + $0x18] sm:$0xff]
        %435 = vset.pattern.permute.xlu0 0
        %436 = vperm.xlu0 %435, %v398
        %v437 = vpop.permute.xlu0 %436
        %440 = vset.pattern.permute.xlu0 0
        %441 = vperm.xlu0 %440, %v400
        %v442 = vpop.permute.xlu0 %441
        %445 = vset.pattern.permute.xlu0 0
        %446 = vperm.xlu0 %445, %v402
        %v447 = vpop.permute.xlu0 %446
        %450 = vset.pattern.permute.xlu0 0
        %451 = vperm.xlu0 %450, %v404
        %v452 = vpop.permute.xlu0 %451
        %v454 = vmul.f32 %v437, %v430
        %v455 = vmul.f32 %v442, %v431
        %v456 = vmul.f32 %v447, %v432
        %v457 = vmul.f32 %v452, %v433
        %v458 = vpack.c.bf16 %v388, %v386
        %v459 = vpack.c.bf16 %v392, %v390
        %v460 = vld [vmem:[%s272] sm:$0xf]
        %v461 = vld [vmem:[%s272 + $0x4] sm:$0xf]
        %v462 = vld [vmem:[%s272 + $0x8] sm:$0xf]
        %v463 = vld [vmem:[%s272 + $0xc] sm:$0xf]
        %v464 = vld [vmem:[%s272 + $0x10] sm:$0xf]
        %v465 = vld [vmem:[%s272 + $0x14] sm:$0xf]
        %v466 = vld [vmem:[%s272 + $0x18] sm:$0xf]
        %v467 = vld [vmem:[%s272 + $0x1c] sm:$0xf]
        %v468 = vld [vmem:[%s272 + $0x20] sm:$0xf]
        %v469 = vld [vmem:[%s272 + $0x24] sm:$0xf]
        %v470 = vld [vmem:[%s272 + $0x28] sm:$0xf]
        %v471 = vld [vmem:[%s272 + $0x2c] sm:$0xf]
        %v472 = vld [vmem:[%s272 + $0x30] sm:$0xf]
        %v473 = vld [vmem:[%s272 + $0x34] sm:$0xf]
        %v474 = vld [vmem:[%s272 + $0x38] sm:$0xf]
        %v475 = vld [vmem:[%s272 + $0x3c] sm:$0xf]
        %v492 = vunpack.c.l.b16 %v460
        %v493 = vunpack.c.l.b16 %v461
        %v494 = vunpack.c.l.b16 %v462
        %v495 = vunpack.c.l.b16 %v463
        %v496 = vunpack.c.l.b16 %v464
        %v497 = vunpack.c.l.b16 %v465
        %v498 = vunpack.c.l.b16 %v466
        %v499 = vunpack.c.l.b16 %v467
        %v500 = vunpack.c.l.b16 %v468
        %v501 = vunpack.c.l.b16 %v469
        %v502 = vunpack.c.l.b16 %v470
        %v503 = vunpack.c.l.b16 %v471
        %v504 = vunpack.c.l.b16 %v472
        %v505 = vunpack.c.l.b16 %v473
        %v506 = vunpack.c.l.b16 %v474
        %v507 = vunpack.c.l.b16 %v475
        %v508 = vpack.c.b16 %v493, %v492
        %v509 = vpack.c.b16 %v495, %v494
        %v510 = vpack.c.b16 %v497, %v496
        %v511 = vpack.c.b16 %v499, %v498
        %v512 = vpack.c.b16 %v501, %v500
        %v513 = vpack.c.b16 %v503, %v502
        %v514 = vpack.c.b16 %v505, %v504
        %v515 = vpack.c.b16 %v507, %v506
        %524 = vmatprep.subr.bf16.mxu0 0
        %525 = vmatpush1.bf16.msra.mxu0 %v508
        %526 = vmatprep.subr.bf16.mxu0 0
        %527 = vmatpush1.bf16.msra.mxu0 %v509
        %528 = vmatprep.subr.bf16.mxu0 0
        %529 = vmatpush1.bf16.msra.mxu0 %v510
        %530 = vmatprep.subr.bf16.mxu0 0
        %531 = vmatpush1.bf16.msra.mxu0 %v511
        %532 = vmatprep.subr.bf16.mxu0 0
        %533 = vmatpush1.bf16.msra.mxu0 %v512
        %534 = vmatprep.subr.bf16.mxu0 0
        %535 = vmatpush1.bf16.msra.mxu0 %v513
        %536 = vmatprep.subr.bf16.mxu0 0
        %537 = vmatpush1.bf16.msra.mxu0 %v514
        %538 = vmatprep.subr.bf16.mxu0 0
        %539 = vmatpush1.bf16.msra.mxu0 %v515
        %540 = vmatprep.subr.bf16.mxu0 0
        %541 = vmatpush1.bf16.msra.mxu0 0
        %542 = vmatprep.subr.bf16.mxu0 0
        %543 = vmatpush1.bf16.msra.mxu0 0
        %544 = vmatprep.subr.bf16.mxu0 0
        %545 = vmatpush1.bf16.msra.mxu0 0
        %546 = vmatprep.subr.bf16.mxu0 0
        %547 = vmatpush1.bf16.msra.mxu0 0
        %548 = vmatprep.subr.bf16.mxu0 0
        %549 = vmatpush1.bf16.msra.mxu0 0
        %550 = vmatprep.subr.bf16.mxu0 0
        %551 = vmatpush1.bf16.msra.mxu0 0
        %552 = vmatprep.subr.bf16.mxu0 0
        %553 = vmatpush1.bf16.msra.mxu0 0
        %554 = vmatprep.subr.bf16.mxu0 0
        %555 = vmatpush1.bf16.msra.mxu0 0
        %556 = vmatprep.mubr.bf16.mxu0 0
        %557 = vmatmul.mubr.bf16.gmra.mrb[0].mxu0 %v458
        %v558 = vpop.f32.mrb[0].mxu0
        %v559 = vadd.f32 0.0, %v558
        %v560 = vpop.f32.mrb[0].mxu0
        %v561 = vpop.f32.mrb[0].mxu0
        %v562 = vadd.f32 0.0, %v561
        %v563 = vpop.f32.mrb[0].mxu0
        %564 = vmatprep.mubr.bf16.mxu0 0
        %565 = vmatmul.mubr.bf16.gmra.mrb[0].mxu0 %v459
        %v566 = vpop.f32.mrb[0].mxu0
        %v567 = vadd.f32 0.0, %v566
        %v568 = vpop.f32.mrb[0].mxu0
        %v569 = vpop.f32.mrb[0].mxu0
        %v570 = vadd.f32 0.0, %v569
        %v571 = vpop.f32.mrb[0].mxu0
        %572 = vdwg.mxu0
        %v573 = vadd.f32 %v454, %v559
        %v574 = vadd.f32 %v455, %v562
        %v575 = vadd.f32 %v456, %v567
        %v576 = vadd.f32 %v457, %v570
        %577 = vst [vmem:[#allocation4] sm:$0xff] %v573
        %578 = vst [vmem:[#allocation4 + $0x8] sm:$0xff] %v574
        %579 = vst [vmem:[#allocation4 + $0x10] sm:$0xff] %v575
        %580 = vst [vmem:[#allocation4 + $0x18] sm:$0xff] %v576
        %581 = vst.msk [vmem:[#allocation2] sm:$0xff] %vm425, %v357
        %582 = vst.msk [vmem:[#allocation2 + $0x8] sm:$0xff] %vm425, %v358
        %583 = vst.msk [vmem:[#allocation2 + $0x10] sm:$0xff] %vm425, %v359
        %584 = vst.msk [vmem:[#allocation2 + $0x18] sm:$0xff] %vm425, %v360
        // Predicated region
        $region41: #{tpu_custom_call.1} parent=35 // pred_check
          %p585 = pneg %p276
        $region42: #{tpu_custom_call.1} parent=35 // pred_check_branch
          %587 = sbr.rel (%p585) target = $region44
        $region43: #{tpu_custom_call.1} parent=35 // pred_region
          %v588 = vld [vmem:[#allocation3] sm:$0xff]
          %v589 = vld [vmem:[#allocation3 + $0x8] sm:$0xff]
          %v590 = vld [vmem:[#allocation3 + $0x10] sm:$0xff]
          %v591 = vld [vmem:[#allocation3 + $0x18] sm:$0xff]
          %vm592 = vcmp.gt.f32.partialorder %v588, 0.0
          %vm593 = vcmp.gt.f32.partialorder %v589, 0.0
          %vm594 = vcmp.gt.f32.partialorder %v590, 0.0
          %vm595 = vcmp.gt.f32.partialorder %v591, 0.0
          %v596 = vrcp.pop %v588
          %v597 = vrcp.pop %v589
          %v598 = vrcp.pop %v590
          %v599 = vrcp.pop %v591
          %v600 = vsel %vm592, %v596, 0.0
          %v601 = vsel %vm593, %v597, 0.0
          %v602 = vsel %vm594, %v598, 0.0
          %v603 = vsel %vm595, %v599, 0.0
          %v604 = vld [vmem:[#allocation4] sm:$0xff]
          %v605 = vld [vmem:[#allocation4 + $0x8] sm:$0xff]
          %v606 = vld [vmem:[#allocation4 + $0x10] sm:$0xff]
          %v607 = vld [vmem:[#allocation4 + $0x18] sm:$0xff]
          %609 = vset.pattern.permute.xlu0 0
          %610 = vperm.xlu0 %609, %v600
          %v611 = vpop.permute.xlu0 %610
          %614 = vset.pattern.permute.xlu0 0
          %615 = vperm.xlu0 %614, %v601
          %v616 = vpop.permute.xlu0 %615
          %619 = vset.pattern.permute.xlu0 0
          %620 = vperm.xlu0 %619, %v602
          %v621 = vpop.permute.xlu0 %620
          %624 = vset.pattern.permute.xlu0 0
          %625 = vperm.xlu0 %624, %v603
          %v626 = vpop.permute.xlu0 %625
          %v628 = vmul.f32 %v604, %v611
          %v629 = vmul.f32 %v605, %v616
          %v630 = vmul.f32 %v606, %v621
          %v631 = vmul.f32 %v607, %v626
          %vm632 = vcmp.gt.f32.partialorder %v628, 0.0
          %vm633 = vcmp.gt.f32.partialorder %v629, 0.0
          %vm634 = vcmp.gt.f32.partialorder %v630, 0.0
          %vm635 = vcmp.gt.f32.partialorder %v631, 0.0
          %v636 = vmul.f32 %v628, 1.442695
          %v637 = vpow.pop %v636
          %v638 = vmul.f32 %v629, 1.442695
          %v639 = vpow.pop %v638
          %v640 = vmul.f32 %v630, 1.442695
          %v641 = vpow.pop %v640
          %v642 = vmul.f32 %v631, 1.442695
          %v643 = vpow.pop %v642
          %v644 = vsub.f32 %v637, 1.0
          %v645 = vsub.f32 %v639, 1.0
          %v646 = vsub.f32 %v641, 1.0
          %v647 = vsub.f32 %v643, 1.0
          %v648 = vsel %vm632, %v628, %v644
          %v649 = vsel %vm633, %v629, %v645
          %v650 = vsel %vm634, %v630, %v646
          %v651 = vsel %vm635, %v631, %v647
          %v652 = vpack.c.bf16 %v649, %v648
          %v653 = vpack.c.bf16 %v651, %v650
          %v656 = vunpack.c.l.b16 %v652
          %v657 = vunpack.c.h.b16 %v652
          %v658 = vunpack.c.l.b16 %v653
          %v659 = vunpack.c.h.b16 %v653
          %v660 = vpack.c.b16 %v656, %v656
          %v661 = vpack.c.b16 %v657, %v657
          %v662 = vpack.c.b16 %v658, %v658
          %v663 = vpack.c.b16 %v659, %v659
          %668 = vst [vmem:[%s251] sm:$0xf] %v660
          %669 = vst [vmem:[%s251 + $0x4] sm:$0xf] %v661
          %670 = vst [vmem:[%s251 + $0x8] sm:$0xf] %v662
          %671 = vst [vmem:[%s251 + $0xc] sm:$0xf] %v663
        $region44: #{tpu_custom_call.1} parent=35 // pred_fallthru
          _
        %s672 = sand.u32 %s144, 1
        %s673 = scalar_lea.sflag [#allocation6], %s672
        %s674 = sand.u32 %s144, 1
        %s675 = smul.addr %s674, 16
        %s676 = scalar_lea.vmem [#allocation5], %s675
        // Predicated region
        $region45: #{tpu_custom_call.1} parent=35 // pred_check
          %p677 = pneg %p154
        $region46: #{tpu_custom_call.1} parent=35 // pred_check_branch
          %679 = sbr.rel (%p677) target = $region48
        $region47: #{tpu_custom_call.1} parent=35 // pred_region
          %s680 = smul.u32 4, %s22
          %s682 = ssub.s32 256, 256
          %683 = vsyncadd %s673, %s682
          %s684 = smul.addr %s680, 64
          %s685 = scalar_lea.hbm %s4, %s684
          %s686 = sshll.u32 %s676, 4
          %s687 = int_to_ptr.vmem [resolvable:$true] %s686
          %692 = dma.vmem_to_hbm [thread:$0]  %s687, 256, %s685, %s673, 64, 64, 4
        $region48: #{tpu_custom_call.1} parent=35 // pred_fallthru
          _
      $region36: #{tpu_custom_call.1} parent=5 // pred_fallthru
        _
      %p693 = scmp.le.s32.totalorder 2, %s13
      // Predicated region
      $region49: #{tpu_custom_call.1} parent=5 // pred_check
        %p694 = pneg %p693
      $region50: #{tpu_custom_call.1} parent=5 // pred_check_branch
        %696 = sbr.rel (%p694) target = $region52
      $region51: #{tpu_custom_call.1} parent=5 // pred_region
        %s697 = ssub.s32 %s13, 2
        // Predicated region
        $region53: #{tpu_custom_call.1} parent=51 // pred_check
          %p698 = pneg %p160
        $region54: #{tpu_custom_call.1} parent=51 // pred_check_branch
          %700 = sbr.rel (%p698) target = $region56
        $region55: #{tpu_custom_call.1} parent=51 // pred_region
          %s701 = sand.u32 %s145, 1
          %s702 = scalar_lea.sflag [#allocation6], %s701
          %s703 = sand.u32 %s145, 1
          %s704 = smul.addr %s703, 16
          %s705 = scalar_lea.vmem [#allocation5], %s704
          %706 = dma.done %s702, 256
        $region56: #{tpu_custom_call.1} parent=51 // pred_fallthru
          _
      $region52: #{tpu_custom_call.1} parent=5 // pred_fallthru
        _
    $region6: #{tpu_custom_call.1} parent=1 // loop_footer
      %s17 = sadd.s32 1, %s13
    $region7: #{tpu_custom_call.1} parent=1 // loop_footer_branch
      %12 = sbr.rel target = $region3
    $region8: #{tpu_custom_call.1} parent=1 // loop_exit
      _
    %707 = vsyncpa [#allocation6], 1
    %s708 = scalar_lea.sflag [#allocation6], 1
    %709 = vsyncpa %s708, 1

</llo_original>
